<compile_context>
chip_gen: v6e
topology: v6e:2x2x1
jax: 0.10.0
libtpu: 0.0.40
codegen_flags: <defaults>
</compile_context>

<pallas_src>
import jax
import jax.numpy as jnp
from jax.experimental import pallas as pl
from jax.experimental.pallas import tpu as pltpu


# ----------------------------------------------------------------------------
# Kernel: one (tm, tn) output tile, reducing over the K grid axis (axis 2).
# ----------------------------------------------------------------------------
def _gemm_bias_kernel(x_ref, w_ref, b_ref, o_ref, acc_ref):
    k = pl.program_id(2)

    # MXU matmul in the inputs' native dtype, f32 accumulation.
    prod = jnp.dot(x_ref[...], w_ref[...], preferred_element_type=jnp.float32)

    @pl.when(k == 0)
    def _():
        # First K step initializes the accumulator directly (no zero + add).
        acc_ref[...] = prod

    @pl.when(k > 0)
    def _():
        acc_ref[...] += prod

    @pl.when(k == pl.num_programs(2) - 1)
    def _():
        # Single lane-dense store of the whole tile; bias added once, in f32
        # (keeps the epilogue f32-only, which is also the fast path on v5e).
        o_ref[...] = (acc_ref[...] + b_ref[...].astype(jnp.float32)).astype(o_ref.dtype)


# ----------------------------------------------------------------------------
# Tiling helpers.
# ----------------------------------------------------------------------------
def _cdiv(a, b):
    return -(-a // b)


def _round_up(x, m):
    return _cdiv(x, m) * m


def _balanced_tile(dim, max_tile, align):
    """Pick a tile <= max_tile that is a multiple of `align` and keeps the
    per-block padding balanced (avoids wasting almost a full tile on awkward
    dims).  Returns (tile, padded_dim) with padded_dim % tile == 0."""
    dim_r = _round_up(max(dim, 1), align)
    max_tile = max(align, _round_up(min(max_tile, dim_r), align))
    n_blocks = _cdiv(dim_r, max_tile)
    tile = _round_up(_cdiv(dim_r, n_blocks), align)
    padded = tile * _cdiv(dim_r, tile)
    return tile, padded


def _vmem_capacity_bytes():
    try:
        return int(pltpu.get_tpu_info().vmem_capacity_bytes)
    except Exception:
        return 64 << 20  # most conservative per-TC VMEM (v7x-class)


def _auto_tiles():
    """Generation-aware default tiles (clamped to the problem size later)."""
    cap = _vmem_capacity_bytes()
    if cap >= (100 << 20):
        # v5e / v6e class (128 MiB VMEM): big tiles for arithmetic intensity.
        return 1024, 1024, 2048
    # v7x class (64 MiB VMEM, ~3.2 TB/s HBM): smaller tiles already reach the
    # compute-bound regime and leave VMEM headroom.
    return 512, 1024, 1024


def _derive_vmem_limit(tm, tn, tk, itemsize):
    """Actual double-buffered footprint + 25% headroom, capped at 90% of
    physical VMEM (never claim the whole v7x VMEM)."""
    x_t = tm * tk * itemsize
    w_t = tk * tn * itemsize
    o_t = tm * tn * itemsize
    b_t = tn * 4
    need = 2 * (x_t + w_t + o_t + b_t) + tm * tn * 4  # 2x bufs + f32 accumulator
    limit = max(32 << 20, int(need * 1.25))
    return min(limit, int(_vmem_capacity_bytes() * 0.9))


# ----------------------------------------------------------------------------
# Adapter fold (call once per weight update and reuse the result).
# ----------------------------------------------------------------------------
def fold_crossover_weight(weight, U, S, V, *, block_size, alpha, compute_dtype=None):
    """Fold the crossover adapter (and its scale) into an effective (in, out)
    weight.  Per perf review: this costs ~3x weight-size HBM traffic, so hoist
    it out of the per-forward hot path and cache the result across calls."""
    out_features, in_features = weight.shape
    d = block_size
    assert in_features % d == 0 and out_features % d == 0
    cd = jax.dtypes.canonicalize_dtype(
        compute_dtype if compute_dtype is not None else weight.dtype)

    scale = jnp.float32(alpha / d) * S[0].astype(jnp.float32)
    # dW[i*d + k, o*d + e] = U[k, i, o] * V[o, k, e]
    dW = jnp.einsum('kio,oke->ikoe', U.astype(jnp.float32), V.astype(jnp.float32))
    dW = dW.reshape(in_features, out_features)
    return (weight.T.astype(jnp.float32) + scale * dW).astype(cd)  # (in, out)


# ----------------------------------------------------------------------------
# Forward with a pre-folded weight: a single tiled GEMM + bias.
# ----------------------------------------------------------------------------
def crossover_linear_folded(x, w_eff, bias, *, tm=None, tn=None, tk=None):
    """x: (..., in); w_eff: (in, out) [from fold_crossover_weight];
    bias: (out,) or None.  Returns (..., out) in x.dtype."""
    orig_shape = x.shape
    in_features = orig_shape[-1]
    out_features = w_eff.shape[1]
    assert w_eff.shape[0] == in_features

    M = 1
    for s in orig_shape[:-1]:
        M *= s
    out_dtype = x.dtype
    cd = jnp.dtype(w_eff.dtype)
    itemsize = cd.itemsize

    # ---- generation-aware default tiles, clamped / balanced to the problem.
    if tm is None or tn is None or tk is None:
        atm, atn, atk = _auto_tiles()
        tm = atm if tm is None else tm
        tn = atn if tn is None else tn
        tk = atk if tk is None else tk

    sub = max(8, 32 // itemsize)  # 8 rows f32, 16 bf16, 32 for 8-bit types
    tm_eff, Mp = _balanced_tile(M, tm, sub)
    tn_eff, Np = _balanced_tile(out_features, tn, 128)
    tk_eff, Kp = _balanced_tile(in_features, tk, 128)

    # v7x megacore: avoid a degenerate (1, 1, K) parallel grid -- split N so
    # the second TensorCore gets work.
    if Mp // tm_eff == 1 and Np // tn_eff == 1 and tn_eff >= 256:
        tn_eff, Np = _balanced_tile(out_features, tn_eff // 2, 128)

    x2 = x.reshape(M, in_features).astype(cd)
    if bias is None:
        b2 = jnp.zeros((1, Np), jnp.float32)
    else:
        b2 = bias.reshape(1, out_features).astype(jnp.float32)
        if Np != out_features:
            b2 = jnp.pad(b2, ((0, 0), (0, Np - out_features)))

    # Padding (only when actually needed).  K padding is required for
    # correctness (zeros in the reduction axis); M/N padding only produces
    # rows/cols that are sliced off below.
    if (Mp, Kp) != (M, in_features):
        x2 = jnp.pad(x2, ((0, Mp - M), (0, Kp - in_features)))
    w2 = w_eff
    if (Kp, Np) != (in_features, out_features):
        w2 = jnp.pad(w2, ((0, Kp - in_features), (0, Np - out_features)))

    grid = (Mp // tm_eff, Np // tn_eff, Kp // tk_eff)
    vmem_limit = _derive_vmem_limit(tm_eff, tn_eff, tk_eff, itemsize)

    out = pl.pallas_call(
        _gemm_bias_kernel,
        out_shape=jax.ShapeDtypeStruct((Mp, Np), out_dtype),
        grid=grid,
        in_specs=[
            pl.BlockSpec((tm_eff, tk_eff), lambda i, j, k: (i, k)),   # x tile
            pl.BlockSpec((tk_eff, tn_eff), lambda i, j, k: (k, j)),   # W_eff tile
            pl.BlockSpec((1, tn_eff), lambda i, j, k: (0, j)),        # bias tile
        ],
        out_specs=pl.BlockSpec((tm_eff, tn_eff), lambda i, j, k: (i, j)),
        scratch_shapes=[pltpu.VMEM((tm_eff, tn_eff), jnp.float32)],
        compiler_params=pltpu.CompilerParams(
            dimension_semantics=("parallel", "parallel", "arbitrary"),
            vmem_limit_bytes=vmem_limit,
        ),
    )(x2, w2, b2)

    if (Mp, Np) != (M, out_features):
        out = out[:M, :out_features]
    return out.reshape(*orig_shape[:-1], out_features)


# ----------------------------------------------------------------------------
# Convenience path matching the module's unmerged forward exactly.
# NOTE (perf): this re-folds W_eff on every call.  For repeated forwards with
# fixed weights, call fold_crossover_weight() once and crossover_linear_folded()
# per step instead.
# ----------------------------------------------------------------------------
def crossover_linear(x, weight, bias, U, S, V, *, block_size, alpha,
                     compute_dtype=None, tm=None, tn=None, tk=None):
    w_eff = fold_crossover_weight(weight, U, S, V, block_size=block_size,
                                  alpha=alpha, compute_dtype=compute_dtype)
    return crossover_linear_folded(x, w_eff, bias, tm=tm, tn=tn, tk=tk)


# ----------------------------------------------------------------------------
# Pure-JAX reference (mirrors the torch forward, dropout = Identity).
# ----------------------------------------------------------------------------
def _reference(x, weight, bias, U, S, V, *, block_size, alpha):
    B, N, in_features = x.shape
    out_features = weight.shape[0]
    res = jnp.einsum('bni,oi->bno', x, weight) + bias
    I = in_features // block_size
    xr = x.reshape(B, N, I, block_size)
    y = jnp.einsum('bnid,dio->bnod', xr, U)
    y = jnp.einsum('bnod,ode->bnoe', y, V)
    scaling = (alpha / block_size) * S[0]
    return res + scaling * y.reshape(B, N, out_features)


if __name__ == "__main__":
    # Small, module-consistent shapes (block_size=64 is the module default).
    B, N = 2, 64
    in_features, out_features = 256, 256
    block_size, alpha = 64, 64
    d = block_size
    I = in_features // d
    O = out_features // d

    key = jax.random.PRNGKey(0)
    kx, kw, kb, ku, kv = jax.random.split(key, 5)

    x = jax.random.normal(kx, (B, N, in_features), jnp.float32)
    weight = jax.random.normal(kw, (out_features, in_features), jnp.float32) * 0.05
    bias = jax.random.normal(kb, (out_features,), jnp.float32) * 0.1
    # Adapter params (shapes from update_layer); nonzero V so the adapter
    # branch actually contributes (the default 'kaiming' init zeroes V).
    U = jax.random.normal(ku, (d, I, O), jnp.float32)
    S = jnp.ones((1,), jnp.float32)
    V = jax.random.normal(kv, (O, d, d), jnp.float32) * 0.05

    ref = _reference(x, weight, bias, U, S, V, block_size=block_size, alpha=alpha)

    fwd = jax.jit(crossover_linear,
                  static_argnames=("block_size", "alpha", "compute_dtype",
                                   "tm", "tn", "tk"))

    # 1) f32 run with small explicit tiles so every grid axis has >1 step
    #    (exercises the first-step init / K reduction / finalize path).
    out = fwd(x, weight, bias, U, S, V, block_size=block_size, alpha=alpha,
              tm=64, tn=128, tk=128)
    out = jax.block_until_ready(out)
    assert out.shape == (B, N, out_features)
    err = jnp.max(jnp.abs(out - ref))
    assert jnp.allclose(out, ref, rtol=1e-3, atol=1e-3), f"f32 max abs err {err}"

    # 2) Hoisted-fold production path: fold once (bf16), reuse W_eff for the
    #    forward with auto (generation-aware) tiles + derived VMEM limit.
    fold = jax.jit(fold_crossover_weight,
                   static_argnames=("block_size", "alpha", "compute_dtype"))
    gemm = jax.jit(crossover_linear_folded, static_argnames=("tm", "tn", "tk"))
    w_eff_bf16 = fold(weight.astype(jnp.bfloat16), U.astype(jnp.bfloat16), S,
                      V.astype(jnp.bfloat16), block_size=block_size, alpha=alpha)
    out_bf16 = gemm(x.astype(jnp.bfloat16), w_eff_bf16, bias.astype(jnp.bfloat16))
    out_bf16 = jax.block_until_ready(out_bf16)
    err_bf16 = jnp.max(jnp.abs(out_bf16.astype(jnp.float32) - ref))
    assert err_bf16 < 0.1, f"bf16 max abs err {err_bf16}"

    # 3) f32 caller opting into bf16 MXU compute (f32 accumulation preserved).
    out_mixed = fwd(x, weight, bias, U, S, V, block_size=block_size, alpha=alpha,
                    compute_dtype=jnp.bfloat16)
    out_mixed = jax.block_until_ready(out_mixed)
    err_mixed = jnp.max(jnp.abs(out_mixed.astype(jnp.float32) - ref))
    assert err_mixed < 0.1, f"mixed bf16-compute max abs err {err_mixed}"

    print("KERNEL_OK")
</pallas_src>

<mosaic_0001>
module attributes {stable_mosaic.version = 11 : i64} {
  func.func @_gemm_bias_kernel(%arg0: i32, %arg1: i32, %arg2: i32, %arg3: memref<64x128xf32, #tpu.memory_space<vmem>>, %arg4: memref<128x128xf32, #tpu.memory_space<vmem>>, %arg5: memref<1x128xf32, #tpu.memory_space<vmem>>, %arg6: memref<64x128xf32, #tpu.memory_space<vmem>>, %arg7: memref<64x128xf32, #tpu.memory_space<vmem>>) attributes {dimension_semantics = [#tpu.dimension_semantics<parallel>, #tpu.dimension_semantics<parallel>, #tpu.dimension_semantics<arbitrary>], iteration_bounds = array<i64: 2, 2, 2>, scalar_prefetch = 0 : i64, scratch_operands = 1 : i64, tpu.core_type = #tpu.core_type<tc>, window_params = [{transform_indices = @transform_0, window_bounds = array<i64: 64, 128>}, {transform_indices = @transform_1, window_bounds = array<i64: 128, 128>}, {transform_indices = @transform_2, window_bounds = array<i64: 1, 128>}, {transform_indices = @transform_3, window_bounds = array<i64: 64, 128>}]} {
    %c0 = arith.constant 0 : index
    %c0_0 = arith.constant 0 : index
    %0 = vector.load %arg3[%c0, %c0_0] : memref<64x128xf32, #tpu.memory_space<vmem>>, vector<64x128xf32>
    %c0_1 = arith.constant 0 : index
    %c0_2 = arith.constant 0 : index
    %1 = vector.load %arg4[%c0_1, %c0_2] : memref<128x128xf32, #tpu.memory_space<vmem>>, vector<128x128xf32>
    %cst = arith.constant dense<0.000000e+00> : vector<64x128xf32>
    %2 = tpu.matmul %0, %1, %cst {dimension_numbers = #tpu.dot_dimension_numbers<[1], [0], [0], [1], [0, 0, 1, 1], [], []>} : vector<64x128xf32>, vector<128x128xf32>, vector<64x128xf32> -> vector<64x128xf32>
    %c0_i32 = arith.constant 0 : i32
    %3 = arith.cmpi eq, %arg2, %c0_i32 : i32
    %4 = arith.extui %3 : i1 to i32
    %c0_i32_3 = arith.constant 0 : i32
    %5 = arith.cmpi ne, %4, %c0_i32_3 : i32
    scf.if %5 {
      %c0_7 = arith.constant 0 : index
      %c0_8 = arith.constant 0 : index
      %12 = vector.load %arg7[%c0_7, %c0_8] : memref<64x128xf32, #tpu.memory_space<vmem>>, vector<64x128xf32>
      tpu.vector_store %arg7[%c0_7, %c0_8], %2 {strides = array<i32>} : memref<64x128xf32, #tpu.memory_space<vmem>>, vector<64x128xf32>,
    } else {
    }
    %c0_i32_4 = arith.constant 0 : i32
    %6 = arith.cmpi sgt, %arg2, %c0_i32_4 : i32
    %7 = arith.extui %6 : i1 to i32
    %c0_i32_5 = arith.constant 0 : i32
    %8 = arith.cmpi ne, %7, %c0_i32_5 : i32
    scf.if %8 {
      %c0_7 = arith.constant 0 : index
      %c0_8 = arith.constant 0 : index
      %12 = vector.load %arg7[%c0_7, %c0_8] : memref<64x128xf32, #tpu.memory_space<vmem>>, vector<64x128xf32>
      %13 = arith.addf %12, %2 : vector<64x128xf32>
      %c0_9 = arith.constant 0 : index
      %c0_10 = arith.constant 0 : index
      %14 = vector.load %arg7[%c0_9, %c0_10] : memref<64x128xf32, #tpu.memory_space<vmem>>, vector<64x128xf32>
      tpu.vector_store %arg7[%c0_9, %c0_10], %13 {strides = array<i32>} : memref<64x128xf32, #tpu.memory_space<vmem>>, vector<64x128xf32>,
    } else {
    }
    %c1_i32 = arith.constant 1 : i32
    %9 = arith.cmpi eq, %arg2, %c1_i32 : i32
    %10 = arith.extui %9 : i1 to i32
    %c0_i32_6 = arith.constant 0 : i32
    %11 = arith.cmpi ne, %10, %c0_i32_6 : i32
    scf.if %11 {
      %c0_7 = arith.constant 0 : index
      %c0_8 = arith.constant 0 : index
      %12 = vector.load %arg7[%c0_7, %c0_8] : memref<64x128xf32, #tpu.memory_space<vmem>>, vector<64x128xf32>
      %c0_9 = arith.constant 0 : index
      %c0_10 = arith.constant 0 : index
      %13 = vector.load %arg5[%c0_9, %c0_10] : memref<1x128xf32, #tpu.memory_space<vmem>>, vector<1x128xf32>
      %14 = vector.broadcast %13 : vector<1x128xf32> to vector<64x128xf32>
      %15 = arith.addf %12, %14 : vector<64x128xf32>
      %c0_11 = arith.constant 0 : index
      %c0_12 = arith.constant 0 : index
      %16 = vector.load %arg6[%c0_11, %c0_12] : memref<64x128xf32, #tpu.memory_space<vmem>>, vector<64x128xf32>
      tpu.vector_store %arg6[%c0_11, %c0_12], %15 {strides = array<i32>} : memref<64x128xf32, #tpu.memory_space<vmem>>, vector<64x128xf32>,
    } else {
    }
    return
  }
  func.func @transform_0(%arg0: i32, %arg1: i32, %arg2: i32) -> (i32, i32) {
    %c0_i32 = arith.constant 0 : i32
    return %arg0, %arg2 : i32, i32
  }
  func.func @transform_1(%arg0: i32, %arg1: i32, %arg2: i32) -> (i32, i32) {
    %c0_i32 = arith.constant 0 : i32
    return %arg2, %arg1 : i32, i32
  }
  func.func @transform_2(%arg0: i32, %arg1: i32, %arg2: i32) -> (i32, i32) {
    %c0_i32 = arith.constant 0 : i32
    %c0_i32_0 = arith.constant 0 : i32
    return %c0_i32, %arg1 : i32, i32
  }
  func.func @transform_3(%arg0: i32, %arg1: i32, %arg2: i32) -> (i32, i32) {
    %c0_i32 = arith.constant 0 : i32
    return %arg0, %arg1 : i32, i32
  }
}

</mosaic_0001>

<llo_original>
// kernel: crossover_linear.1
$region0: #{crossover_linear.1}
  #allocation0 [shape = 'u32[]', space=smem, size = 0x4, offset = 0x4, fixed_abs, tag = 'smem constant byte address 0x4 - core index']
  #allocation1 [shape = 'u32[144,128]{1,0:T(1,128)}', space=vmem, size = 0x12000, scoped, tag = 'internal scratch']
  #allocation2 [shape = 'f32[64,128]{1,0:T(8,128)}', space=vmem, size = 0x8000, scoped, tag = 'scratch operand']
  %s0 = inlined_call_operand.vmem [shape: f32[128,256], index: 0, kind: input, shape index: {}]
  %s1 = inlined_call_operand.vmem [shape: f32[256,256], index: 1, kind: input, shape index: {}]
  %s2 = inlined_call_operand.vmem [shape: f32[1,256], index: 2, kind: input, shape index: {}]
  %s3 = inlined_call_operand.hbm [shape: f32[128,256], index: 3, kind: output, shape index: {}]
  %s4 = sld [smem:[#allocation0]]
  $region133: #{crossover_linear.1} parent=0
    _
  %s6 = ssub.s32 1, %s4
  %s7 = scalar_select 0, %s6, %s4
  $region1: #{crossover_linear.1} parent=0
    #allocation3 [shape = 'u8[65536]{0}', space=vmem, size = 0x10000, scoped, tag = 'input window, operand 0']
    #allocation4 [shape = 'u8[131072]{0}', space=vmem, size = 0x20000, scoped, tag = 'input window, operand 1']
    #allocation5 [shape = 'u8[65536]{0}', space=vmem, size = 0x10000, scoped, tag = 'output window, operand 0']
    #allocation6 [shape = 's32[2]{0}', space=sflag, size = 0x8, scoped, tag = 'scoped memory for crossover_linear.1']
    %8 = vsyncpa [#allocation6], 0
    %s9 = scalar_lea.sflag [#allocation6], 1
    %10 = vsyncpa %s9, 0
    loop: start=0, step=1, limit=10
    $region2: #{crossover_linear.1} parent=1 // loop_pre_header
      _
    $region3: #{crossover_linear.1} parent=1 // loop_header
      %s12 = sphi 0, %s16
      %p13 = scmp.ge.s32.totalorder %s12, 10
      %s19 = sphi 0, %s38
      %s20 = sphi 0, %s34
      %s21 = sphi 0, %s30
      %s22 = sphi 0, %s19
      %s23 = sphi 0, %s20
      %s24 = sphi 0, %s21
      %s25 = sphi 0, %s22
      %s26 = sphi 0, %s23
      %s27 = sphi 0, %s24
      %s43 = sphi 0, %s45
      %s46 = sphi 0, %s43
      %s47 = sphi 0, %s46
      %s63 = sphi 0, %s47
      %s71 = sphi 0, %s73
      %s74 = sphi 0, %s71
      %s75 = sphi 0, %s74
      %s91 = sphi 0, %s75
      %s97 = sphi 0, %s99
      %s100 = sphi 0, %s97
      %s101 = sphi 0, %s100
      %s117 = sphi 0, %s101
      %s125 = sphi 0, %s127
      %s128 = sphi 0, %s125
      %s129 = sphi 0, %s128
      %s145 = sphi 0, %s129
    $region4: #{crossover_linear.1} parent=1 // loop_header_branch
      %15 = sbr.rel (%p13) target = $region8
    $region5: #{crossover_linear.1} parent=1 // loop_body
      %s17 = ssub.s32 %s12, 1
      %s18 = ssub.s32 %s12, 2
      %s28 = sadd.s32 1, %s21
      %p29 = scmp.ge.s32.totalorder %s28, 2
      %s30 = scalar_select %p29, 0, %s28
      %s31 = sadd.s32 1, %s20
      %s32 = scalar_select %p29, %s31, %s20
      %p33 = scmp.ge.s32.totalorder %s32, 2
      %s34 = scalar_select %p33, 0, %s32
      %s35 = sadd.s32 1, %s19
      %s36 = scalar_select %p33, %s35, %s19
      %p37 = scmp.ge.s32.totalorder %s36, 2
      %s38 = scalar_select %p37, 0, %s36
      %s39 = ssub.s32 %s19, %s38
      %s40 = ssub.s32 %s21, %s30
      %s41 = sor.u32 %s39, %s40
      %p42 = scmp.eq.s32.totalorder %s41, 0
      %s44 = sadd.s32 %s43, 1
      %s45 = scalar_select %p42, %s43, %s44
      %p48 = pneg %p42
      %p49 = scmp.eq.s32.totalorder %s12, 7
      %p50 = por %p48, %p49
      %p51 = scmp.ne.s32.totalorder %s43, %s46
      %p52 = scmp.eq.s32.totalorder %s12, 0
      %p53 = por %p51, %p52
      %p54 = scmp.ne.s32.totalorder %s43, %s46
      %p55 = scmp.eq.s32.totalorder %s17, 7
      %p56 = por %p54, %p55
      %p57 = scmp.ne.s32.totalorder %s46, %s47
      %p58 = scmp.eq.s32.totalorder %s17, 0
      %p59 = por %p57, %p58
      %p60 = scmp.ne.s32.totalorder %s46, %s47
      %p61 = scmp.eq.s32.totalorder %s18, 7
      %p62 = por %p60, %p61
      %p64 = scmp.ne.s32.totalorder %s47, %s63
      %p65 = scmp.eq.s32.totalorder %s18, 0
      %p66 = por %p64, %p65
      %s67 = ssub.s32 %s21, %s30
      %s68 = ssub.s32 %s20, %s34
      %s69 = sor.u32 %s67, %s68
      %p70 = scmp.eq.s32.totalorder %s69, 0
      %s72 = sadd.s32 %s71, 1
      %s73 = scalar_select %p70, %s71, %s72
      %p76 = pneg %p70
      %p77 = scmp.eq.s32.totalorder %s12, 7
      %p78 = por %p76, %p77
      %p79 = scmp.ne.s32.totalorder %s71, %s74
      %p80 = scmp.eq.s32.totalorder %s12, 0
      %p81 = por %p79, %p80
      %p82 = scmp.ne.s32.totalorder %s71, %s74
      %p83 = scmp.eq.s32.totalorder %s17, 7
      %p84 = por %p82, %p83
      %p85 = scmp.ne.s32.totalorder %s74, %s75
      %p86 = scmp.eq.s32.totalorder %s17, 0
      %p87 = por %p85, %p86
      %p88 = scmp.ne.s32.totalorder %s74, %s75
      %p89 = scmp.eq.s32.totalorder %s18, 7
      %p90 = por %p88, %p89
      %p92 = scmp.ne.s32.totalorder %s75, %s91
      %p93 = scmp.eq.s32.totalorder %s18, 0
      %p94 = por %p92, %p93
      %s95 = ssub.s32 %s20, %s34
      %p96 = scmp.eq.s32.totalorder %s95, 0
      %s98 = sadd.s32 %s97, 1
      %s99 = scalar_select %p96, %s97, %s98
      %p102 = pneg %p96
      %p103 = scmp.eq.s32.totalorder %s12, 7
      %p104 = por %p102, %p103
      %p105 = scmp.ne.s32.totalorder %s97, %s100
      %p106 = scmp.eq.s32.totalorder %s12, 0
      %p107 = por %p105, %p106
      %p108 = scmp.ne.s32.totalorder %s97, %s100
      %p109 = scmp.eq.s32.totalorder %s17, 7
      %p110 = por %p108, %p109
      %p111 = scmp.ne.s32.totalorder %s100, %s101
      %p112 = scmp.eq.s32.totalorder %s17, 0
      %p113 = por %p111, %p112
      %p114 = scmp.ne.s32.totalorder %s100, %s101
      %p115 = scmp.eq.s32.totalorder %s18, 7
      %p116 = por %p114, %p115
      %p118 = scmp.ne.s32.totalorder %s101, %s117
      %p119 = scmp.eq.s32.totalorder %s18, 0
      %p120 = por %p118, %p119
      %s121 = ssub.s32 %s19, %s38
      %s122 = ssub.s32 %s20, %s34
      %s123 = sor.u32 %s121, %s122
      %p124 = scmp.eq.s32.totalorder %s123, 0
      %s126 = sadd.s32 %s125, 1
      %s127 = scalar_select %p124, %s125, %s126
      %p130 = pneg %p124
      %p131 = scmp.eq.s32.totalorder %s12, 7
      %p132 = por %p130, %p131
      %p133 = scmp.ne.s32.totalorder %s125, %s128
      %p134 = scmp.eq.s32.totalorder %s12, 0
      %p135 = por %p133, %p134
      %p136 = scmp.ne.s32.totalorder %s125, %s128
      %p137 = scmp.eq.s32.totalorder %s17, 7
      %p138 = por %p136, %p137
      %p139 = scmp.ne.s32.totalorder %s128, %s129
      %p140 = scmp.eq.s32.totalorder %s17, 0
      %p141 = por %p139, %p140
      %p142 = scmp.ne.s32.totalorder %s128, %s129
      %p143 = scmp.eq.s32.totalorder %s18, 7
      %p144 = por %p142, %p143
      %p146 = scmp.ne.s32.totalorder %s129, %s145
      %p147 = scmp.eq.s32.totalorder %s18, 0
      %p148 = por %p146, %p147
      %p149 = scmp.le.s32.totalorder 1, %s12
      %p150 = scmp.lt.s32.totalorder %s12, 9
      %p151 = pnand %p149, %p150
      %p152 = pneg %p151
      // Predicated region
      $region9: #{crossover_linear.1} parent=5 // pred_check
        _
      $region10: #{crossover_linear.1} parent=5 // pred_check_branch
        %154 = sbr.rel (%p151) target = $region12
      $region11: #{crossover_linear.1} parent=5 // pred_region
        %s155 = ssub.s32 %s12, 1
      $region12: #{crossover_linear.1} parent=5 // pred_fallthru
        _
      %p156 = scmp.lt.s32.totalorder %s12, 8
      // Predicated region
      $region13: #{crossover_linear.1} parent=5 // pred_check
        %p157 = pneg %p156
      $region14: #{crossover_linear.1} parent=5 // pred_check_branch
        %159 = sbr.rel (%p157) target = $region16
      $region15: #{crossover_linear.1} parent=5 // pred_region
        // Predicated region
        $region17: #{crossover_linear.1} parent=15 // pred_check
          %p160 = pneg %p53
        $region18: #{crossover_linear.1} parent=15 // pred_check_branch
          %162 = sbr.rel (%p160) target = $region20
        $region19: #{crossover_linear.1} parent=15 // pred_region
          %s163 = sand.u32 %s43, 1
          %s164 = sand.u32 %s43, 1
          %s165 = smul.addr %s164, 64
          %s166 = scalar_lea.vmem [#allocation3], %s165
          %s167 = smul.u32 8, %s19
          %s168 = smul.addr %s167, 2
          %s169 = sadd.s32 %s21, %s168
          %s170 = smul.addr %s169, 8
          %s171 = scalar_lea.vmem %s0, %s170
          // Predicated region
          $region21: #{crossover_linear.1} parent=19 // pred_check
            _
          $region22: #{crossover_linear.1} parent=19 // pred_check_branch
            %173 = sbr.rel (0) target = $region24
          $region23: #{crossover_linear.1} parent=19 // pred_region
            // Predicated region
            $region25: #{crossover_linear.1} parent=23 // pred_check
              _
            $region26: #{crossover_linear.1} parent=23 // pred_check_branch
              %175 = sbr.rel (0) target = $region28
            $region27: #{crossover_linear.1} parent=23 // pred_region
              // Predicated region
              $region40: #{crossover_linear.1} parent=27 // pred_check
                _
              $region41: #{crossover_linear.1} parent=27 // pred_check_branch
                %205 = sbr.rel (0) target = $region43
              $region42: #{crossover_linear.1} parent=27 // pred_region
                loop: start=0, step=1, limit=1
                $region44: #{crossover_linear.1} parent=42 // loop_pre_header
                  _
                $region45: #{crossover_linear.1} parent=42 // loop_header
                  %s207 = sphi 0, %s211
                  %p208 = scmp.ge.s32.totalorder %s207, 1
                  %s212 = sphi %s171, %s171
                  %s213 = sphi %s166, %s166
                $region46: #{crossover_linear.1} parent=42 // loop_header_branch
                  %210 = sbr.rel (%p208) target = $region50
                $region47: #{crossover_linear.1} parent=42 // loop_body
                  %v214 = vld [vmem:[%s212] sm:$0xff]
                  %215 = vst [vmem:[%s213] sm:$0xff] %v214
                  %v216 = vld [vmem:[%s212 + $0x10] sm:$0xff]
                  %217 = vst [vmem:[%s213 + $0x8] sm:$0xff] %v216
                  %v218 = vld [vmem:[%s212 + $0x20] sm:$0xff]
                  %219 = vst [vmem:[%s213 + $0x10] sm:$0xff] %v218
                  %v220 = vld [vmem:[%s212 + $0x30] sm:$0xff]
                  %221 = vst [vmem:[%s213 + $0x18] sm:$0xff] %v220
                  %v222 = vld [vmem:[%s212 + $0x40] sm:$0xff]
                  %223 = vst [vmem:[%s213 + $0x20] sm:$0xff] %v222
                  %v224 = vld [vmem:[%s212 + $0x50] sm:$0xff]
                  %225 = vst [vmem:[%s213 + $0x28] sm:$0xff] %v224
                  %v226 = vld [vmem:[%s212 + $0x60] sm:$0xff]
                  %227 = vst [vmem:[%s213 + $0x30] sm:$0xff] %v226
                  %v228 = vld [vmem:[%s212 + $0x70] sm:$0xff]
                  %229 = vst [vmem:[%s213 + $0x38] sm:$0xff] %v228
                $region48: #{crossover_linear.1} parent=42 // loop_footer
                  %s211 = sadd.s32 1, %s207
                $region49: #{crossover_linear.1} parent=42 // loop_footer_branch
                  %206 = sbr.rel target = $region45
                $region50: #{crossover_linear.1} parent=42 // loop_exit
                  _
              $region43: #{crossover_linear.1} parent=27 // pred_fallthru
                _
              // Predicated region
              $region51: #{crossover_linear.1} parent=27 // pred_check
                _
              $region52: #{crossover_linear.1} parent=27 // pred_check_branch
                %231 = sbr.rel target = $region54
              $region53: #{crossover_linear.1} parent=27 // pred_region
                _
              $region54: #{crossover_linear.1} parent=27 // pred_fallthru
                _
            $region28: #{crossover_linear.1} parent=23 // pred_fallthru
              _
            // Predicated region
            $region29: #{crossover_linear.1} parent=23 // pred_check
              _
            $region30: #{crossover_linear.1} parent=23 // pred_check_branch
              %177 = sbr.rel target = $region32
            $region31: #{crossover_linear.1} parent=23 // pred_region
              %s179 = ssub.s32 256, 1
              loop: start=0, step=1, limit=1
              $region33: #{crossover_linear.1} parent=31 // loop_pre_header
                _
              $region34: #{crossover_linear.1} parent=31 // loop_header
                %s181 = sphi 0, %s185
                %p182 = scmp.ge.s32.totalorder %s181, 1
                %s186 = sphi %s171, %s171
                %s187 = sphi %s166, %s166
              $region35: #{crossover_linear.1} parent=31 // loop_header_branch
                %184 = sbr.rel (%p182) target = $region39
              $region36: #{crossover_linear.1} parent=31 // loop_body
                %v188 = vld [vmem:[%s186] sm:%s179]
                %189 = vst [vmem:[%s187] sm:%s179] %v188
                %v190 = vld [vmem:[%s186 + $0x10] sm:%s179]
                %191 = vst [vmem:[%s187 + $0x8] sm:%s179] %v190
                %v192 = vld [vmem:[%s186 + $0x20] sm:%s179]
                %193 = vst [vmem:[%s187 + $0x10] sm:%s179] %v192
                %v194 = vld [vmem:[%s186 + $0x30] sm:%s179]
                %195 = vst [vmem:[%s187 + $0x18] sm:%s179] %v194
                %v196 = vld [vmem:[%s186 + $0x40] sm:%s179]
                %197 = vst [vmem:[%s187 + $0x20] sm:%s179] %v196
                %v198 = vld [vmem:[%s186 + $0x50] sm:%s179]
                %199 = vst [vmem:[%s187 + $0x28] sm:%s179] %v198
                %v200 = vld [vmem:[%s186 + $0x60] sm:%s179]
                %201 = vst [vmem:[%s187 + $0x30] sm:%s179] %v200
                %v202 = vld [vmem:[%s186 + $0x70] sm:%s179]
                %203 = vst [vmem:[%s187 + $0x38] sm:%s179] %v202
              $region37: #{crossover_linear.1} parent=31 // loop_footer
                %s185 = sadd.s32 1, %s181
              $region38: #{crossover_linear.1} parent=31 // loop_footer_branch
                %180 = sbr.rel target = $region34
              $region39: #{crossover_linear.1} parent=31 // loop_exit
                _
            $region32: #{crossover_linear.1} parent=23 // pred_fallthru
              _
          $region24: #{crossover_linear.1} parent=19 // pred_fallthru
            _
          %232 = vnop
        $region20: #{crossover_linear.1} parent=15 // pred_fallthru
          _
        // Predicated region
        $region55: #{crossover_linear.1} parent=15 // pred_check
          %p233 = pneg %p81
        $region56: #{crossover_linear.1} parent=15 // pred_check_branch
          %235 = sbr.rel (%p233) target = $region58
        $region57: #{crossover_linear.1} parent=15 // pred_region
          %s236 = sand.u32 %s71, 1
          %s237 = sand.u32 %s71, 1
          %s238 = smul.addr %s237, 128
          %s239 = scalar_lea.vmem [#allocation4], %s238
          %s240 = smul.u32 16, %s21
          %s241 = smul.addr %s240, 2
          %s242 = sadd.s32 %s20, %s241
          %s243 = smul.addr %s242, 8
          %s244 = scalar_lea.vmem %s1, %s243
          // Predicated region
          $region59: #{crossover_linear.1} parent=57 // pred_check
            _
          $region60: #{crossover_linear.1} parent=57 // pred_check_branch
            %246 = sbr.rel (0) target = $region62
          $region61: #{crossover_linear.1} parent=57 // pred_region
            // Predicated region
            $region63: #{crossover_linear.1} parent=61 // pred_check
              _
            $region64: #{crossover_linear.1} parent=61 // pred_check_branch
              %248 = sbr.rel (0) target = $region66
            $region65: #{crossover_linear.1} parent=61 // pred_region
              // Predicated region
              $region78: #{crossover_linear.1} parent=65 // pred_check
                _
              $region79: #{crossover_linear.1} parent=65 // pred_check_branch
                %294 = sbr.rel (0) target = $region81
              $region80: #{crossover_linear.1} parent=65 // pred_region
                loop: start=0, step=1, limit=1
                $region82: #{crossover_linear.1} parent=80 // loop_pre_header
                  _
                $region83: #{crossover_linear.1} parent=80 // loop_header
                  %s296 = sphi 0, %s300
                  %p297 = scmp.ge.s32.totalorder %s296, 1
                  %s301 = sphi %s244, %s244
                  %s302 = sphi %s239, %s239
                $region84: #{crossover_linear.1} parent=80 // loop_header_branch
                  %299 = sbr.rel (%p297) target = $region88
                $region85: #{crossover_linear.1} parent=80 // loop_body
                  %v303 = vld [vmem:[%s301] sm:$0xff]
                  %304 = vst [vmem:[%s302] sm:$0xff] %v303
                  %v305 = vld [vmem:[%s301 + $0x10] sm:$0xff]
                  %306 = vst [vmem:[%s302 + $0x8] sm:$0xff] %v305
                  %v307 = vld [vmem:[%s301 + $0x20] sm:$0xff]
                  %308 = vst [vmem:[%s302 + $0x10] sm:$0xff] %v307
                  %v309 = vld [vmem:[%s301 + $0x30] sm:$0xff]
                  %310 = vst [vmem:[%s302 + $0x18] sm:$0xff] %v309
                  %v311 = vld [vmem:[%s301 + $0x40] sm:$0xff]
                  %312 = vst [vmem:[%s302 + $0x20] sm:$0xff] %v311
                  %v313 = vld [vmem:[%s301 + $0x50] sm:$0xff]
                  %314 = vst [vmem:[%s302 + $0x28] sm:$0xff] %v313
                  %v315 = vld [vmem:[%s301 + $0x60] sm:$0xff]
                  %316 = vst [vmem:[%s302 + $0x30] sm:$0xff] %v315
                  %v317 = vld [vmem:[%s301 + $0x70] sm:$0xff]
                  %318 = vst [vmem:[%s302 + $0x38] sm:$0xff] %v317
                  %v319 = vld [vmem:[%s301 + $0x80] sm:$0xff]
                  %320 = vst [vmem:[%s302 + $0x40] sm:$0xff] %v319
                  %v321 = vld [vmem:[%s301 + $0x90] sm:$0xff]
                  %322 = vst [vmem:[%s302 + $0x48] sm:$0xff] %v321
                  %v323 = vld [vmem:[%s301 + $0xa0] sm:$0xff]
                  %324 = vst [vmem:[%s302 + $0x50] sm:$0xff] %v323
                  %v325 = vld [vmem:[%s301 + $0xb0] sm:$0xff]
                  %326 = vst [vmem:[%s302 + $0x58] sm:$0xff] %v325
                  %v327 = vld [vmem:[%s301 + $0xc0] sm:$0xff]
                  %328 = vst [vmem:[%s302 + $0x60] sm:$0xff] %v327
                  %v329 = vld [vmem:[%s301 + $0xd0] sm:$0xff]
                  %330 = vst [vmem:[%s302 + $0x68] sm:$0xff] %v329
                  %v331 = vld [vmem:[%s301 + $0xe0] sm:$0xff]
                  %332 = vst [vmem:[%s302 + $0x70] sm:$0xff] %v331
                  %v333 = vld [vmem:[%s301 + $0xf0] sm:$0xff]
                  %334 = vst [vmem:[%s302 + $0x78] sm:$0xff] %v333
                $region86: #{crossover_linear.1} parent=80 // loop_footer
                  %s300 = sadd.s32 1, %s296
                $region87: #{crossover_linear.1} parent=80 // loop_footer_branch
                  %295 = sbr.rel target = $region83
                $region88: #{crossover_linear.1} parent=80 // loop_exit
                  _
              $region81: #{crossover_linear.1} parent=65 // pred_fallthru
                _
              // Predicated region
              $region89: #{crossover_linear.1} parent=65 // pred_check
                _
              $region90: #{crossover_linear.1} parent=65 // pred_check_branch
                %336 = sbr.rel target = $region92
              $region91: #{crossover_linear.1} parent=65 // pred_region
                _
              $region92: #{crossover_linear.1} parent=65 // pred_fallthru
                _
            $region66: #{crossover_linear.1} parent=61 // pred_fallthru
              _
            // Predicated region
            $region67: #{crossover_linear.1} parent=61 // pred_check
              _
            $region68: #{crossover_linear.1} parent=61 // pred_check_branch
              %250 = sbr.rel target = $region70
            $region69: #{crossover_linear.1} parent=61 // pred_region
              %s252 = ssub.s32 256, 1
              loop: start=0, step=1, limit=1
              $region71: #{crossover_linear.1} parent=69 // loop_pre_header
                _
              $region72: #{crossover_linear.1} parent=69 // loop_header
                %s254 = sphi 0, %s258
                %p255 = scmp.ge.s32.totalorder %s254, 1
                %s259 = sphi %s244, %s244
                %s260 = sphi %s239, %s239
              $region73: #{crossover_linear.1} parent=69 // loop_header_branch
                %257 = sbr.rel (%p255) target = $region77
              $region74: #{crossover_linear.1} parent=69 // loop_body
                %v261 = vld [vmem:[%s259] sm:%s252]
                %262 = vst [vmem:[%s260] sm:%s252] %v261
                %v263 = vld [vmem:[%s259 + $0x10] sm:%s252]
                %264 = vst [vmem:[%s260 + $0x8] sm:%s252] %v263
                %v265 = vld [vmem:[%s259 + $0x20] sm:%s252]
                %266 = vst [vmem:[%s260 + $0x10] sm:%s252] %v265
                %v267 = vld [vmem:[%s259 + $0x30] sm:%s252]
                %268 = vst [vmem:[%s260 + $0x18] sm:%s252] %v267
                %v269 = vld [vmem:[%s259 + $0x40] sm:%s252]
                %270 = vst [vmem:[%s260 + $0x20] sm:%s252] %v269
                %v271 = vld [vmem:[%s259 + $0x50] sm:%s252]
                %272 = vst [vmem:[%s260 + $0x28] sm:%s252] %v271
                %v273 = vld [vmem:[%s259 + $0x60] sm:%s252]
                %274 = vst [vmem:[%s260 + $0x30] sm:%s252] %v273
                %v275 = vld [vmem:[%s259 + $0x70] sm:%s252]
                %276 = vst [vmem:[%s260 + $0x38] sm:%s252] %v275
                %v277 = vld [vmem:[%s259 + $0x80] sm:%s252]
                %278 = vst [vmem:[%s260 + $0x40] sm:%s252] %v277
                %v279 = vld [vmem:[%s259 + $0x90] sm:%s252]
                %280 = vst [vmem:[%s260 + $0x48] sm:%s252] %v279
                %v281 = vld [vmem:[%s259 + $0xa0] sm:%s252]
                %282 = vst [vmem:[%s260 + $0x50] sm:%s252] %v281
                %v283 = vld [vmem:[%s259 + $0xb0] sm:%s252]
                %284 = vst [vmem:[%s260 + $0x58] sm:%s252] %v283
                %v285 = vld [vmem:[%s259 + $0xc0] sm:%s252]
                %286 = vst [vmem:[%s260 + $0x60] sm:%s252] %v285
                %v287 = vld [vmem:[%s259 + $0xd0] sm:%s252]
                %288 = vst [vmem:[%s260 + $0x68] sm:%s252] %v287
                %v289 = vld [vmem:[%s259 + $0xe0] sm:%s252]
                %290 = vst [vmem:[%s260 + $0x70] sm:%s252] %v289
                %v291 = vld [vmem:[%s259 + $0xf0] sm:%s252]
                %292 = vst [vmem:[%s260 + $0x78] sm:%s252] %v291
              $region75: #{crossover_linear.1} parent=69 // loop_footer
                %s258 = sadd.s32 1, %s254
              $region76: #{crossover_linear.1} parent=69 // loop_footer_branch
                %253 = sbr.rel target = $region72
              $region77: #{crossover_linear.1} parent=69 // loop_exit
                _
            $region70: #{crossover_linear.1} parent=61 // pred_fallthru
              _
          $region62: #{crossover_linear.1} parent=57 // pred_fallthru
            _
          %337 = vnop
        $region58: #{crossover_linear.1} parent=15 // pred_fallthru
          _
        // Predicated region
        $region93: #{crossover_linear.1} parent=15 // pred_check
          %p338 = pneg %p107
        $region94: #{crossover_linear.1} parent=15 // pred_check_branch
          %340 = sbr.rel (%p338) target = $region96
        $region95: #{crossover_linear.1} parent=15 // pred_region
          %p341 = scmp.lt.s32.totalorder %s20, 1
          %s342 = scalar_select %p341, %s20, 1
          %s343 = scalar_lea.vmem %s2, %s342
        $region96: #{crossover_linear.1} parent=15 // pred_fallthru
          _
      $region16: #{crossover_linear.1} parent=5 // pred_fallthru
        _
      %p344 = scmp.le.s32.totalorder 1, %s12
      %p345 = scmp.lt.s32.totalorder %s12, 9
      %p346 = pnand %p344, %p345
      %p347 = pneg %p346
      // Predicated region
      $region97: #{crossover_linear.1} parent=5 // pred_check
        _
      $region98: #{crossover_linear.1} parent=5 // pred_check_branch
        %349 = sbr.rel (%p346) target = $region100
      $region99: #{crossover_linear.1} parent=5 // pred_region
        %s350 = ssub.s32 %s12, 1
        %s351 = sand.u32 %s46, 1
        %s352 = sand.u32 %s46, 1
        %s353 = smul.addr %s352, 64
        %s354 = scalar_lea.vmem [#allocation3], %s353
        // Predicated region
        $region101: #{crossover_linear.1} parent=99 // pred_check
          %p355 = pneg %p59
        $region102: #{crossover_linear.1} parent=99 // pred_check_branch
          %357 = sbr.rel (%p355) target = $region104
        $region103: #{crossover_linear.1} parent=99 // pred_region
          _
        $region104: #{crossover_linear.1} parent=99 // pred_fallthru
          _
        %s358 = sand.u32 %s74, 1
        %s359 = sand.u32 %s74, 1
        %s360 = smul.addr %s359, 128
        %s361 = scalar_lea.vmem [#allocation4], %s360
        // Predicated region
        $region105: #{crossover_linear.1} parent=99 // pred_check
          %p362 = pneg %p87
        $region106: #{crossover_linear.1} parent=99 // pred_check_branch
          %364 = sbr.rel (%p362) target = $region108
        $region107: #{crossover_linear.1} parent=99 // pred_region
          _
        $region108: #{crossover_linear.1} parent=99 // pred_fallthru
          _
        %s365 = sand.u32 %s46, 1
        %s366 = sand.u32 %s46, 1
        %s367 = smul.addr %s366, 64
        %s368 = scalar_lea.vmem [#allocation3], %s367
        %p369 = pneg %p59
        %p370 = pneg %p56
        %s371 = sand.u32 %s74, 1
        %s372 = sand.u32 %s74, 1
        %s373 = smul.addr %s372, 128
        %s374 = scalar_lea.vmem [#allocation4], %s373
        %p375 = pneg %p87
        %p376 = pneg %p84
        %p377 = scmp.lt.s32.totalorder %s23, 1
        %s378 = scalar_select %p377, %s23, 1
        %s379 = scalar_lea.vmem %s2, %s378
        %p380 = pneg %p113
        %p381 = pneg %p110
        %p382 = pneg %p141
        %p383 = pneg %p138
        %s384 = sand.u32 %s128, 1
        %s385 = scalar_lea.sflag [#allocation6], %s384
        %s386 = sand.u32 %s128, 1
        %s387 = smul.addr %s386, 64
        %s388 = scalar_lea.vmem [#allocation5], %s387
        %s389 = smul.u32 8, %s22
        %s390 = smul.u32 16, %s24
        %p391 = scmp.lt.s32.totalorder %s23, 1
        %s392 = scalar_select %p391, %s23, 1
        %s393 = scalar_lea.vmem %s2, %s392
        %s394 = smul.u32 8, %s22
        %v395 = vld [vmem:[%s354] sm:$0xff]
        %v396 = vld [vmem:[%s354 + $0x8] sm:$0xff]
        %v397 = vld [vmem:[%s354 + $0x10] sm:$0xff]
        %v398 = vld [vmem:[%s354 + $0x18] sm:$0xff]
        %v399 = vld [vmem:[%s354 + $0x20] sm:$0xff]
        %v400 = vld [vmem:[%s354 + $0x28] sm:$0xff]
        %v401 = vld [vmem:[%s354 + $0x30] sm:$0xff]
        %v402 = vld [vmem:[%s354 + $0x38] sm:$0xff]
        %v403 = vld [vmem:[%s361] sm:$0xff]
        %v404 = vld [vmem:[%s361 + $0x8] sm:$0xff]
        %v405 = vld [vmem:[%s361 + $0x10] sm:$0xff]
        %v406 = vld [vmem:[%s361 + $0x18] sm:$0xff]
        %v407 = vld [vmem:[%s361 + $0x20] sm:$0xff]
        %v408 = vld [vmem:[%s361 + $0x28] sm:$0xff]
        %v409 = vld [vmem:[%s361 + $0x30] sm:$0xff]
        %v410 = vld [vmem:[%s361 + $0x38] sm:$0xff]
        %v411 = vld [vmem:[%s361 + $0x40] sm:$0xff]
        %v412 = vld [vmem:[%s361 + $0x48] sm:$0xff]
        %v413 = vld [vmem:[%s361 + $0x50] sm:$0xff]
        %v414 = vld [vmem:[%s361 + $0x58] sm:$0xff]
        %v415 = vld [vmem:[%s361 + $0x60] sm:$0xff]
        %v416 = vld [vmem:[%s361 + $0x68] sm:$0xff]
        %v417 = vld [vmem:[%s361 + $0x70] sm:$0xff]
        %v418 = vld [vmem:[%s361 + $0x78] sm:$0xff]
        %419 = vmatprep.subr.mxu0 0.0
        %420 = vmatpush1.msra.mxu0 %v418
        %421 = vmatprep.subr.mxu0 0.0
        %422 = vmatpush1.msra.mxu0 %v417
        %423 = vmatprep.subr.mxu0 0.0
        %424 = vmatpush1.msra.mxu0 %v416
        %425 = vmatprep.subr.mxu0 0.0
        %426 = vmatpush1.msra.mxu0 %v415
        %427 = vmatprep.subr.mxu0 0.0
        %428 = vmatpush1.msra.mxu0 %v414
        %429 = vmatprep.subr.mxu0 0.0
        %430 = vmatpush1.msra.mxu0 %v413
        %431 = vmatprep.subr.mxu0 0.0
        %432 = vmatpush1.msra.mxu0 %v412
        %433 = vmatprep.subr.mxu0 0.0
        %434 = vmatpush1.msra.mxu0 %v411
        %435 = vmatprep.subr.mxu0 0.0
        %436 = vmatpush1.msra.mxu0 %v410
        %437 = vmatprep.subr.mxu0 0.0
        %438 = vmatpush1.msra.mxu0 %v409
        %439 = vmatprep.subr.mxu0 0.0
        %440 = vmatpush1.msra.mxu0 %v408
        %441 = vmatprep.subr.mxu0 0.0
        %442 = vmatpush1.msra.mxu0 %v407
        %443 = vmatprep.subr.mxu0 0.0
        %444 = vmatpush1.msra.mxu0 %v406
        %445 = vmatprep.subr.mxu0 0.0
        %446 = vmatpush1.msra.mxu0 %v405
        %447 = vmatprep.subr.mxu0 0.0
        %448 = vmatpush1.msra.mxu0 %v404
        %449 = vmatprep.subr.mxu0 0.0
        %450 = vmatpush1.msra.mxu0 %v403
        %451 = vmatprep.subr.mxu0 0.0
        %452 = vmatpush2.msra.mxu0 0.0
        %453 = vmatprep.subr.mxu0 0.0
        %454 = vmatpush2.msra.mxu0 0.0
        %455 = vmatprep.subr.mxu0 0.0
        %456 = vmatpush2.msra.mxu0 0.0
        %457 = vmatprep.subr.mxu0 0.0
        %458 = vmatpush2.msra.mxu0 0.0
        %459 = vmatprep.subr.mxu0 0.0
        %460 = vmatpush2.msra.mxu0 0.0
        %461 = vmatprep.subr.mxu0 0.0
        %462 = vmatpush2.msra.mxu0 0.0
        %463 = vmatprep.subr.mxu0 0.0
        %464 = vmatpush2.msra.mxu0 0.0
        %465 = vmatprep.subr.mxu0 0.0
        %466 = vmatpush2.msra.mxu0 0.0
        %467 = vmatprep.subr.mxu0 0.0
        %468 = vmatpush2.msra.mxu0 0.0
        %469 = vmatprep.subr.mxu0 0.0
        %470 = vmatpush2.msra.mxu0 0.0
        %471 = vmatprep.subr.mxu0 0.0
        %472 = vmatpush2.msra.mxu0 0.0
        %473 = vmatprep.subr.mxu0 0.0
        %474 = vmatpush2.msra.mxu0 0.0
        %475 = vmatprep.subr.mxu0 0.0
        %476 = vmatpush2.msra.mxu0 0.0
        %477 = vmatprep.subr.mxu0 0.0
        %478 = vmatpush2.msra.mxu0 0.0
        %479 = vmatprep.subr.mxu0 0.0
        %480 = vmatpush2.msra.mxu0 0.0
        %481 = vmatprep.subr.mxu0 0.0
        %482 = vmatpush2.msra.mxu0 0.0
        %483 = vmatprep.mubr.f32.mxu0 0.0
        %484 = vmatmul.mubr.f32.gmra.mxu0 %v395
        %v485 = vpop.f32.mrf.mxu0
        %v486 = vadd.f32 0.0, %v485
        %v487 = vpop.f32.mrf.mxu0
        %488 = vmatprep.mubr.f32.mxu0 0.0
        %489 = vmatmul.mubr.f32.gmra.mxu0 %v396
        %v490 = vpop.f32.mrf.mxu0
        %v491 = vadd.f32 0.0, %v490
        %v492 = vpop.f32.mrf.mxu0
        %493 = vmatprep.mubr.f32.mxu0 0.0
        %494 = vmatmul.mubr.f32.gmra.mxu0 %v397
        %v495 = vpop.f32.mrf.mxu0
        %v496 = vadd.f32 0.0, %v495
        %v497 = vpop.f32.mrf.mxu0
        %498 = vmatprep.mubr.f32.mxu0 0.0
        %499 = vmatmul.mubr.f32.gmra.mxu0 %v398
        %v500 = vpop.f32.mrf.mxu0
        %v501 = vadd.f32 0.0, %v500
        %v502 = vpop.f32.mrf.mxu0
        %503 = vmatprep.mubr.f32.mxu0 0.0
        %504 = vmatmul.mubr.f32.gmra.mxu0 %v399
        %v505 = vpop.f32.mrf.mxu0
        %v506 = vadd.f32 0.0, %v505
        %v507 = vpop.f32.mrf.mxu0
        %508 = vmatprep.mubr.f32.mxu0 0.0
        %509 = vmatmul.mubr.f32.gmra.mxu0 %v400
        %v510 = vpop.f32.mrf.mxu0
        %v511 = vadd.f32 0.0, %v510
        %v512 = vpop.f32.mrf.mxu0
        %513 = vmatprep.mubr.f32.mxu0 0.0
        %514 = vmatmul.mubr.f32.gmra.mxu0 %v401
        %v515 = vpop.f32.mrf.mxu0
        %v516 = vadd.f32 0.0, %v515
        %v517 = vpop.f32.mrf.mxu0
        %518 = vmatprep.mubr.f32.mxu0 0.0
        %519 = vmatmul.mubr.f32.gmra.mxu0 %v402
        %v520 = vpop.f32.mrf.mxu0
        %v521 = vadd.f32 0.0, %v520
        %v522 = vpop.f32.mrf.mxu0
        %523 = vdwg.mxu0
        %p524 = scmp.eq.s32.totalorder %s24, 0
        // Predicated region
        $region109: #{crossover_linear.1} parent=99 // pred_check
          %p525 = pneg %p524
        $region110: #{crossover_linear.1} parent=99 // pred_check_branch
          %527 = sbr.rel (%p525) target = $region112
        $region111: #{crossover_linear.1} parent=99 // pred_region
          %528 = vst [vmem:[#allocation2] sm:$0xff] %v486
          %529 = vst [vmem:[#allocation2 + $0x8] sm:$0xff] %v491
          %530 = vst [vmem:[#allocation2 + $0x10] sm:$0xff] %v496
          %531 = vst [vmem:[#allocation2 + $0x18] sm:$0xff] %v501
          %532 = vst [vmem:[#allocation2 + $0x20] sm:$0xff] %v506
          %533 = vst [vmem:[#allocation2 + $0x28] sm:$0xff] %v511
          %534 = vst [vmem:[#allocation2 + $0x30] sm:$0xff] %v516
          %535 = vst [vmem:[#allocation2 + $0x38] sm:$0xff] %v521
        $region112: #{crossover_linear.1} parent=99 // pred_fallthru
          _
        %p536 = scmp.gt.s32.totalorder %s24, 0
        // Predicated region
        $region113: #{crossover_linear.1} parent=99 // pred_check
          %p537 = pneg %p536
        $region114: #{crossover_linear.1} parent=99 // pred_check_branch
          %539 = sbr.rel (%p537) target = $region116
        $region115: #{crossover_linear.1} parent=99 // pred_region
          %v540 = vld [vmem:[#allocation2] sm:$0xff]
          %v541 = vld [vmem:[#allocation2 + $0x8] sm:$0xff]
          %v542 = vld [vmem:[#allocation2 + $0x10] sm:$0xff]
          %v543 = vld [vmem:[#allocation2 + $0x18] sm:$0xff]
          %v544 = vld [vmem:[#allocation2 + $0x20] sm:$0xff]
          %v545 = vld [vmem:[#allocation2 + $0x28] sm:$0xff]
          %v546 = vld [vmem:[#allocation2 + $0x30] sm:$0xff]
          %v547 = vld [vmem:[#allocation2 + $0x38] sm:$0xff]
          %v548 = vadd.f32 %v540, %v486
          %v549 = vadd.f32 %v541, %v491
          %v550 = vadd.f32 %v542, %v496
          %v551 = vadd.f32 %v543, %v501
          %v552 = vadd.f32 %v544, %v506
          %v553 = vadd.f32 %v545, %v511
          %v554 = vadd.f32 %v546, %v516
          %v555 = vadd.f32 %v547, %v521
          %556 = vst [vmem:[#allocation2] sm:$0xff] %v548
          %557 = vst [vmem:[#allocation2 + $0x8] sm:$0xff] %v549
          %558 = vst [vmem:[#allocation2 + $0x10] sm:$0xff] %v550
          %559 = vst [vmem:[#allocation2 + $0x18] sm:$0xff] %v551
          %560 = vst [vmem:[#allocation2 + $0x20] sm:$0xff] %v552
          %561 = vst [vmem:[#allocation2 + $0x28] sm:$0xff] %v553
          %562 = vst [vmem:[#allocation2 + $0x30] sm:$0xff] %v554
          %563 = vst [vmem:[#allocation2 + $0x38] sm:$0xff] %v555
        $region116: #{crossover_linear.1} parent=99 // pred_fallthru
          _
        %p564 = scmp.eq.s32.totalorder %s24, 1
        // Predicated region
        $region117: #{crossover_linear.1} parent=99 // pred_check
          %p565 = pneg %p564
        $region118: #{crossover_linear.1} parent=99 // pred_check_branch
          %567 = sbr.rel (%p565) target = $region120
        $region119: #{crossover_linear.1} parent=99 // pred_region
          %v568 = vld [vmem:[#allocation2] sm:$0xff]
          %v569 = vld [vmem:[#allocation2 + $0x8] sm:$0xff]
          %v570 = vld [vmem:[#allocation2 + $0x10] sm:$0xff]
          %v571 = vld [vmem:[#allocation2 + $0x18] sm:$0xff]
          %v572 = vld [vmem:[#allocation2 + $0x20] sm:$0xff]
          %v573 = vld [vmem:[#allocation2 + $0x28] sm:$0xff]
          %v574 = vld [vmem:[#allocation2 + $0x30] sm:$0xff]
          %v575 = vld [vmem:[#allocation2 + $0x38] sm:$0xff]
          %v576 = vld [vmem:[%s393] sm:$0x1]
          %v578 = vlaneseq
          %v579 = vshrl.u32 %v578, 7
          %v580 = vsub.s32 0, %v579
          %v581 = vrot.slane %v576, %v580
          %v583 = vadd.f32 %v568, %v581
          %v584 = vadd.f32 %v569, %v581
          %v585 = vadd.f32 %v570, %v581
          %v586 = vadd.f32 %v571, %v581
          %v587 = vadd.f32 %v572, %v581
          %v588 = vadd.f32 %v573, %v581
          %v589 = vadd.f32 %v574, %v581
          %v590 = vadd.f32 %v575, %v581
          %591 = vst [vmem:[%s388] sm:$0xff] %v583
          %592 = vst [vmem:[%s388 + $0x8] sm:$0xff] %v584
          %593 = vst [vmem:[%s388 + $0x10] sm:$0xff] %v585
          %594 = vst [vmem:[%s388 + $0x18] sm:$0xff] %v586
          %595 = vst [vmem:[%s388 + $0x20] sm:$0xff] %v587
          %596 = vst [vmem:[%s388 + $0x28] sm:$0xff] %v588
          %597 = vst [vmem:[%s388 + $0x30] sm:$0xff] %v589
          %598 = vst [vmem:[%s388 + $0x38] sm:$0xff] %v590
        $region120: #{crossover_linear.1} parent=99 // pred_fallthru
          _
        %s599 = sand.u32 %s128, 1
        %s600 = scalar_lea.sflag [#allocation6], %s599
        %s601 = sand.u32 %s128, 1
        %s602 = smul.addr %s601, 64
        %s603 = scalar_lea.vmem [#allocation5], %s602
        // Predicated region
        $region121: #{crossover_linear.1} parent=99 // pred_check
          %p604 = pneg %p138
        $region122: #{crossover_linear.1} parent=99 // pred_check_branch
          %606 = sbr.rel (%p604) target = $region124
        $region123: #{crossover_linear.1} parent=99 // pred_region
          %s607 = smul.u32 8, %s22
          %s609 = ssub.s32 1024, 1024
          %610 = vsyncadd %s600, %s609
          %s611 = smul.addr %s607, 2
          %s612 = sadd.s32 %s23, %s611
          %s613 = smul.addr %s612, 128
          %s614 = scalar_lea.hbm %s3, %s613
          %s615 = sshll.u32 %s603, 4
          %s616 = int_to_ptr.vmem [resolvable:$true] %s615
          %621 = dma.vmem_to_hbm [thread:$0]  %s616, 1024, %s614, %s600, 128, 256, 8
        $region124: #{crossover_linear.1} parent=99 // pred_fallthru
          _
      $region100: #{crossover_linear.1} parent=5 // pred_fallthru
        _
      %p622 = scmp.le.s32.totalorder 2, %s12
      // Predicated region
      $region125: #{crossover_linear.1} parent=5 // pred_check
        %p623 = pneg %p622
      $region126: #{crossover_linear.1} parent=5 // pred_check_branch
        %625 = sbr.rel (%p623) target = $region128
      $region127: #{crossover_linear.1} parent=5 // pred_region
        %s626 = ssub.s32 %s12, 2
        // Predicated region
        $region129: #{crossover_linear.1} parent=127 // pred_check
          %p627 = pneg %p144
        $region130: #{crossover_linear.1} parent=127 // pred_check_branch
          %629 = sbr.rel (%p627) target = $region132
        $region131: #{crossover_linear.1} parent=127 // pred_region
          %s630 = sand.u32 %s129, 1
          %s631 = scalar_lea.sflag [#allocation6], %s630
          %s632 = sand.u32 %s129, 1
          %s633 = smul.addr %s632, 64
          %s634 = scalar_lea.vmem [#allocation5], %s633
          %635 = dma.done %s631, 1024
        $region132: #{crossover_linear.1} parent=127 // pred_fallthru
          _
      $region128: #{crossover_linear.1} parent=5 // pred_fallthru
        _
    $region6: #{crossover_linear.1} parent=1 // loop_footer
      %s16 = sadd.s32 1, %s12
    $region7: #{crossover_linear.1} parent=1 // loop_footer_branch
      %11 = sbr.rel target = $region3
    $region8: #{crossover_linear.1} parent=1 // loop_exit
      _
    %636 = vsyncpa [#allocation6], 1
    %s637 = scalar_lea.sflag [#allocation6], 1
    %638 = vsyncpa %s637, 1

</llo_original>
